<compile_context>
chip_gen: v5e
topology: v5e:2x2
jax: 0.10.0
libtpu: 0.0.40
codegen_flags: <defaults>
</compile_context>

<pallas_src>
import functools

import jax
import jax.numpy as jnp
from jax.experimental import pallas as pl
from jax.experimental.pallas import tpu as pltpu


def _round_up(x, m):
    return (x + m - 1) // m * m


def _pick_m_blk(m_total, m_bytes_per_row, budget_bytes):
    """Pick the M tile: multiple of 8, low padding waste, >=4 grid steps if possible."""
    cands = [c for c in (1024, 512, 384, 256, 128, 64, 32, 16, 8)
             if c * m_bytes_per_row <= budget_bytes]
    if not cands:
        cands = [8]

    def key(mb):
        m_pad = _round_up(m_total, mb)
        waste = m_pad - m_total
        grid = m_pad // mb
        return (
            (waste / m_pad) > 0.05,  # prefer <=5% row padding
            grid < 4,                # prefer >=4 grid steps (2 per TC on v7x)
            waste,                   # then minimize padded rows
            -mb,                     # then the largest tile (amortize step overhead)
        )

    return min(cands, key=key)


def transition_kernel(xt_ref, xb_ref, w_ref, b_ref, o_ref, *, cp):
    # xt_ref/xb_ref: (M_BLK, 2*Cp) bf16 -- even / odd H rows, W-pair channels concatenated
    # w_ref        : (Cp, Cop)     bf16 -- 0.25 * (BN-scale-folded conv weight)
    # b_ref        : (1, Cop)      f32  -- shift @ W (BN shift folded through the conv)
    # o_ref        : (M_BLK, Cop)
    #
    # 2x2 average pooling commuted ahead of the 1x1 conv: H-pair and W-pair sums
    # on the VPU (lane-aligned static slices), then one GEMM on the MXU.
    h = (xt_ref[:, :cp] + xt_ref[:, cp:]) + (xb_ref[:, :cp] + xb_ref[:, cp:])
    y = jnp.dot(h, w_ref[...], preferred_element_type=jnp.float32)  # (M_BLK, Cop) f32
    o_ref[...] = (y + b_ref[...]).astype(o_ref.dtype)


def transition_forward(x_nchw, gamma, beta, running_mean, running_var, conv_w,
                       eps=1e-5, out_dtype=jnp.float32):
    """x_nchw: (N, Cin, H, W); conv_w: (Cout, Cin, 1, 1). Returns (N, Cout, H//2, W//2)."""
    N, Cin, H, W = x_nchw.shape
    Cout = conv_w.shape[0]
    assert H % 2 == 0 and W % 2 == 0
    H2, W2 = H // 2, W // 2

    Cp = _round_up(Cin, 128)    # lane-pad input channels
    Cop = _round_up(Cout, 128)  # lane-pad output channels
    K = 2 * Cp                  # W-pair channels concatenated in the activation rows

    # ---- fold BN into the conv weight + bias (tiny weight-side transform in XLA) ----
    inv_std = 1.0 / jnp.sqrt(running_var.astype(jnp.float32) + eps)
    scale = gamma.astype(jnp.float32) * inv_std                         # (Cin,)
    shift = beta.astype(jnp.float32) - running_mean.astype(jnp.float32) * scale
    w_mat = conv_w.reshape(Cout, Cin).T.astype(jnp.float32)             # (Cin, Cout)
    w_fold = scale[:, None] * w_mat                                     # BN scale folded
    bias = shift @ w_mat                                                # (Cout,)

    w_fold_p = jnp.pad(w_fold, ((0, Cp - Cin), (0, Cop - Cout)))
    w_k = (0.25 * w_fold_p).astype(jnp.bfloat16)                        # (Cp, Cop)
    bias_p = jnp.pad(bias, (0, Cop - Cout)).reshape(1, Cop).astype(jnp.float32)

    # ---- activation prep (one multi-output XLA fusion): NHWC, pad C, bf16, regroup ----
    x = jnp.transpose(x_nchw, (0, 2, 3, 1))                             # (N, H, W, Cin)
    x = jnp.pad(x, ((0, 0), (0, 0), (0, 0), (0, Cp - Cin))).astype(jnp.bfloat16)
    x = x.reshape(N, H, W2, K)                                          # W-pair channels concat
    x = x.reshape(N, H2, 2, W2, K)
    M_total = N * H2 * W2
    x_top = x[:, :, 0].reshape(M_total, K)                              # even H rows
    x_bot = x[:, :, 1].reshape(M_total, K)                              # odd H rows

    # ---- VMEM accounting & tiling ----
    out_itemsize = jnp.dtype(out_dtype).itemsize
    weight_vmem = Cp * Cop * 2 + Cop * 4                 # single-buffered constants
    m_bytes_per_row = (
        2 * (K * 2) * 2                                  # x_top + x_bot bf16, double-buffered
        + Cop * out_itemsize * 2                         # output tile, double-buffered
        + Cp * 2 + 2 * Cop * 4                           # in-kernel h + f32 intermediates
    )
    budget = max(20 * 2**20 - weight_vmem, 4 * 2**20)
    M_BLK = _pick_m_blk(M_total, m_bytes_per_row, budget)
    M_pad = _round_up(M_total, M_BLK)
    if M_pad != M_total:
        x_top = jnp.pad(x_top, ((0, M_pad - M_total), (0, 0)))
        x_bot = jnp.pad(x_bot, ((0, M_pad - M_total), (0, 0)))

    footprint = weight_vmem + M_BLK * m_bytes_per_row
    vmem_limit = int(min(max(32 * 2**20, int(1.5 * footprint)), 48 * 2**20))

    out_flat = pl.pallas_call(
        functools.partial(transition_kernel, cp=Cp),
        out_shape=jax.ShapeDtypeStruct((M_pad, Cop), out_dtype),
        grid=(M_pad // M_BLK,),
        in_specs=[
            pl.BlockSpec((M_BLK, K), lambda i: (i, 0)),
            pl.BlockSpec((M_BLK, K), lambda i: (i, 0)),
            # Constant blocks: single-buffer (double-buffering a fixed tile buys nothing).
            pl.BlockSpec((Cp, Cop), lambda i: (0, 0), pipeline_mode=pl.Buffered(1)),
            pl.BlockSpec((1, Cop), lambda i: (0, 0), pipeline_mode=pl.Buffered(1)),
        ],
        out_specs=pl.BlockSpec((M_BLK, Cop), lambda i: (i, 0)),
        compiler_params=pltpu.CompilerParams(
            dimension_semantics=("parallel",),
            vmem_limit_bytes=vmem_limit,
        ),
    )(x_top, x_bot, w_k, bias_p)

    out = out_flat[:M_total, :Cout].reshape(N, H2, W2, Cout)
    return jnp.transpose(out, (0, 3, 1, 2))                             # NHWC -> NCHW


def transition_reference(x, gamma, beta, running_mean, running_var, conv_w, eps=1e-5):
    """Pure-JAX f32 reference in NCHW (mirrors the PyTorch forward in eval mode)."""
    N, Cin, H, W = x.shape
    Cout = conv_w.shape[0]
    xn = (x - running_mean[None, :, None, None]) / jnp.sqrt(
        running_var[None, :, None, None] + eps)
    xn = xn * gamma[None, :, None, None] + beta[None, :, None, None]
    y = jnp.einsum("nchw,oc->nohw", xn, conv_w.reshape(Cout, Cin))
    y = y.reshape(N, Cout, H // 2, 2, W // 2, 2).mean(axis=(3, 5))
    return y


if __name__ == "__main__":
    key = jax.random.PRNGKey(0)
    k1, k2, k3, k4, k5, k6 = jax.random.split(key, 6)

    N, Cin, Cout, H, W = 2, 4, 2, 16, 16

    x = jax.random.normal(k1, (N, Cin, H, W), dtype=jnp.float32)
    gamma = 1.0 + 0.1 * jax.random.normal(k2, (Cin,), dtype=jnp.float32)
    beta = 0.1 * jax.random.normal(k3, (Cin,), dtype=jnp.float32)
    running_mean = 0.1 * jax.random.normal(k4, (Cin,), dtype=jnp.float32)
    running_var = 0.5 + jax.random.uniform(k5, (Cin,), dtype=jnp.float32)
    conv_w = jax.random.normal(k6, (Cout, Cin, 1, 1), dtype=jnp.float32) * 0.1

    out = transition_forward(x, gamma, beta, running_mean, running_var, conv_w)
    out = jax.block_until_ready(out)

    ref = transition_reference(x, gamma, beta, running_mean, running_var, conv_w)
    assert out.shape == (N, Cout, H // 2, W // 2), out.shape
    # bf16 activations/weights with bf16 pooling pre-sums (f32 MXU accumulation)
    # -> tolerance sized for bf16.
    assert jnp.allclose(out, ref, atol=3e-2, rtol=3e-2), \
        f"max abs err {jnp.max(jnp.abs(out - ref))}"

    print("KERNEL_OK")
</pallas_src>

<mosaic_0001>
module attributes {stable_mosaic.version = 11 : i64} {
  func.func @transition_kernel(%arg0: i32, %arg1: memref<32x256xbf16, #tpu.memory_space<vmem>>, %arg2: memref<32x256xbf16, #tpu.memory_space<vmem>>, %arg3: memref<128x128xbf16, #tpu.memory_space<vmem>>, %arg4: memref<1x128xf32, #tpu.memory_space<vmem>>, %arg5: memref<32x128xf32, #tpu.memory_space<vmem>>) attributes {dimension_semantics = [#tpu.dimension_semantics<parallel>], iteration_bounds = array<i64: 4>, scalar_prefetch = 0 : i64, scratch_operands = 0 : i64, tpu.core_type = #tpu.core_type<tc>, window_params = [{transform_indices = @transform_0, window_bounds = array<i64: 32, 256>}, {transform_indices = @transform_1, window_bounds = array<i64: 32, 256>}, {pipeline_mode = #tpu.pipeline_mode<synchronous>, transform_indices = @transform_2, window_bounds = array<i64: 128, 128>}, {pipeline_mode = #tpu.pipeline_mode<synchronous>, transform_indices = @transform_3, window_bounds = array<i64: 1, 128>}, {transform_indices = @transform_4, window_bounds = array<i64: 32, 128>}]} {
    %c0 = arith.constant 0 : index
    %c0_0 = arith.constant 0 : index
    %0 = vector.load %arg1[%c0, %c0_0] : memref<32x256xbf16, #tpu.memory_space<vmem>>, vector<32x128xbf16>
    %c0_1 = arith.constant 0 : index
    %c128 = arith.constant 128 : index
    %1 = vector.load %arg1[%c0_1, %c128] : memref<32x256xbf16, #tpu.memory_space<vmem>>, vector<32x128xbf16>
    %2 = arith.addf %0, %1 : vector<32x128xbf16>
    %c0_2 = arith.constant 0 : index
    %c0_3 = arith.constant 0 : index
    %3 = vector.load %arg2[%c0_2, %c0_3] : memref<32x256xbf16, #tpu.memory_space<vmem>>, vector<32x128xbf16>
    %c0_4 = arith.constant 0 : index
    %c128_5 = arith.constant 128 : index
    %4 = vector.load %arg2[%c0_4, %c128_5] : memref<32x256xbf16, #tpu.memory_space<vmem>>, vector<32x128xbf16>
    %5 = arith.addf %3, %4 : vector<32x128xbf16>
    %6 = arith.addf %2, %5 : vector<32x128xbf16>
    %c0_6 = arith.constant 0 : index
    %c0_7 = arith.constant 0 : index
    %7 = vector.load %arg3[%c0_6, %c0_7] : memref<128x128xbf16, #tpu.memory_space<vmem>>, vector<128x128xbf16>
    %cst = arith.constant dense<0.000000e+00> : vector<32x128xf32>
    %8 = tpu.matmul %6, %7, %cst {dimension_numbers = #tpu.dot_dimension_numbers<[1], [0], [0], [1], [0, 0, 1, 1], [], []>} : vector<32x128xbf16>, vector<128x128xbf16>, vector<32x128xf32> -> vector<32x128xf32>
    %c0_8 = arith.constant 0 : index
    %c0_9 = arith.constant 0 : index
    %9 = vector.load %arg4[%c0_8, %c0_9] : memref<1x128xf32, #tpu.memory_space<vmem>>, vector<1x128xf32>
    %10 = vector.broadcast %9 : vector<1x128xf32> to vector<32x128xf32>
    %11 = arith.addf %8, %10 : vector<32x128xf32>
    %c0_10 = arith.constant 0 : index
    %c0_11 = arith.constant 0 : index
    %12 = vector.load %arg5[%c0_10, %c0_11] : memref<32x128xf32, #tpu.memory_space<vmem>>, vector<32x128xf32>
    tpu.vector_store %arg5[%c0_10, %c0_11], %11 {strides = array<i32>} : memref<32x128xf32, #tpu.memory_space<vmem>>, vector<32x128xf32>,
    return
  }
  func.func @transform_0(%arg0: i32) -> (i32, i32) {
    %c0_i32 = arith.constant 0 : i32
    %c0_i32_0 = arith.constant 0 : i32
    return %arg0, %c0_i32 : i32, i32
  }
  func.func @transform_1(%arg0: i32) -> (i32, i32) {
    %c0_i32 = arith.constant 0 : i32
    %c0_i32_0 = arith.constant 0 : i32
    return %arg0, %c0_i32 : i32, i32
  }
  func.func @transform_2(%arg0: i32) -> (i32, i32) {
    %c0_i32 = arith.constant 0 : i32
    %c0_i32_0 = arith.constant 0 : i32
    %c0_i32_1 = arith.constant 0 : i32
    return %c0_i32, %c0_i32_0 : i32, i32
  }
  func.func @transform_3(%arg0: i32) -> (i32, i32) {
    %c0_i32 = arith.constant 0 : i32
    %c0_i32_0 = arith.constant 0 : i32
    %c0_i32_1 = arith.constant 0 : i32
    return %c0_i32, %c0_i32_0 : i32, i32
  }
  func.func @transform_4(%arg0: i32) -> (i32, i32) {
    %c0_i32 = arith.constant 0 : i32
    %c0_i32_0 = arith.constant 0 : i32
    return %arg0, %c0_i32 : i32, i32
  }
}

</mosaic_0001>

<llo_original>
// kernel: tpu_custom_call.1
$region0: #{tpu_custom_call.1}
  #allocation0 [shape = 'u32[]', space=smem, size = 0x4, offset = 0x4, fixed_abs, tag = 'smem constant byte address 0x4 - core index']
  #allocation1 [shape = 'u32[72,128]{1,0:T(1,128)}', space=vmem, size = 0x9000, scoped, tag = 'internal scratch']
  %s0 = inlined_call_operand.hbm [shape: bf16[128,256], index: 0, kind: input, shape index: {}]
  %s1 = inlined_call_operand.hbm [shape: bf16[128,256], index: 1, kind: input, shape index: {}]
  %s2 = inlined_call_operand.hbm [shape: bf16[128,128], index: 2, kind: input, shape index: {}]
  %s3 = inlined_call_operand.vmem [shape: f32[1,128], index: 3, kind: input, shape index: {}]
  %s4 = inlined_call_operand.hbm [shape: f32[128,128], index: 4, kind: output, shape index: {}]
  %s5 = sld [smem:[#allocation0]]
  $region61: #{tpu_custom_call.1} parent=0
    _
  %s7 = ssub.s32 1, %s5
  %s8 = scalar_select 0, %s7, %s5
  $region1: #{tpu_custom_call.1} parent=0
    #allocation2 [shape = 'u8[32768]{0}', space=vmem, size = 0x8000, scoped, tag = 'input window, operand 0']
    #allocation3 [shape = 's32[2]{0}', space=sflag, size = 0x8, scoped, tag = 'scoped memory for tpu_custom_call.1']
    #allocation4 [shape = 's32[2]{0}', space=sflag, size = 0x8, scoped, tag = 'scoped memory for tpu_custom_call.1']
    #allocation5 [shape = 'u8[32768]{0}', space=vmem, size = 0x8000, scoped, tag = 'input window, operand 1']
    #allocation6 [shape = 's32[2]{0}', space=sflag, size = 0x8, scoped, tag = 'scoped memory for tpu_custom_call.1']
    #allocation7 [shape = 'u8[32768]{0}', space=vmem, size = 0x8000, scoped, tag = 'input window, operand 2, single buffered']
    #allocation8 [shape = 'u8[32768]{0}', space=vmem, size = 0x8000, scoped, tag = 'output window, operand 0']
    %9 = vsyncpa [#allocation3], 0
    %s10 = scalar_lea.sflag [#allocation3], 1
    %11 = vsyncpa %s10, 0
    %12 = vsyncpa [#allocation6], 0
    %s13 = scalar_lea.sflag [#allocation6], 1
    %14 = vsyncpa %s13, 0
    %15 = vsyncpa [#allocation4], 0
    %s16 = scalar_lea.sflag [#allocation4], 1
    %17 = vsyncpa %s16, 0
    loop: start=0, step=1, limit=6
    $region2: #{tpu_custom_call.1} parent=1 // loop_pre_header
      _
    $region3: #{tpu_custom_call.1} parent=1 // loop_header
      %s19 = sphi 0, %s23
      %p20 = scmp.ge.s32.totalorder %s19, 6
      %s29 = sphi 0, %s31
      %s32 = sphi 0, %s29
      %s33 = sphi 0, %s32
      %s49 = sphi 0, %s33
      %s55 = sphi 0, %s57
      %s58 = sphi 0, %s55
      %s59 = sphi 0, %s58
      %s75 = sphi 0, %s59
      %s79 = sphi 0, %s79
      %s81 = sphi 0, %s79
      %s82 = sphi 0, %s81
      %s96 = sphi 0, %s82
      %s100 = sphi 0, %s100
      %s102 = sphi 0, %s100
      %s103 = sphi 0, %s102
      %s117 = sphi 0, %s103
      %s123 = sphi 0, %s125
      %s126 = sphi 0, %s123
      %s127 = sphi 0, %s126
      %s143 = sphi 0, %s127
    $region4: #{tpu_custom_call.1} parent=1 // loop_header_branch
      %22 = sbr.rel (%p20) target = $region8
    $region5: #{tpu_custom_call.1} parent=1 // loop_body
      %s24 = ssub.s32 %s19, 1
      %s25 = ssub.s32 %s19, 2
      %s26 = sadd.s32 %s19, 1
      %s27 = ssub.s32 %s19, %s26
      %p28 = scmp.eq.s32.totalorder %s27, 0
      %s30 = sadd.s32 %s29, 1
      %s31 = scalar_select %p28, %s29, %s30
      %p34 = pneg %p28
      %p35 = scmp.eq.s32.totalorder %s19, 3
      %p36 = por %p34, %p35
      %p37 = scmp.ne.s32.totalorder %s29, %s32
      %p38 = scmp.eq.s32.totalorder %s19, 0
      %p39 = por %p37, %p38
      %p40 = scmp.ne.s32.totalorder %s29, %s32
      %p41 = scmp.eq.s32.totalorder %s24, 3
      %p42 = por %p40, %p41
      %p43 = scmp.ne.s32.totalorder %s32, %s33
      %p44 = scmp.eq.s32.totalorder %s24, 0
      %p45 = por %p43, %p44
      %p46 = scmp.ne.s32.totalorder %s32, %s33
      %p47 = scmp.eq.s32.totalorder %s25, 3
      %p48 = por %p46, %p47
      %p50 = scmp.ne.s32.totalorder %s33, %s49
      %p51 = scmp.eq.s32.totalorder %s25, 0
      %p52 = por %p50, %p51
      %s53 = ssub.s32 %s19, %s26
      %p54 = scmp.eq.s32.totalorder %s53, 0
      %s56 = sadd.s32 %s55, 1
      %s57 = scalar_select %p54, %s55, %s56
      %p60 = pneg %p54
      %p61 = scmp.eq.s32.totalorder %s19, 3
      %p62 = por %p60, %p61
      %p63 = scmp.ne.s32.totalorder %s55, %s58
      %p64 = scmp.eq.s32.totalorder %s19, 0
      %p65 = por %p63, %p64
      %p66 = scmp.ne.s32.totalorder %s55, %s58
      %p67 = scmp.eq.s32.totalorder %s24, 3
      %p68 = por %p66, %p67
      %p69 = scmp.ne.s32.totalorder %s58, %s59
      %p70 = scmp.eq.s32.totalorder %s24, 0
      %p71 = por %p69, %p70
      %p72 = scmp.ne.s32.totalorder %s58, %s59
      %p73 = scmp.eq.s32.totalorder %s25, 3
      %p74 = por %p72, %p73
      %p76 = scmp.ne.s32.totalorder %s59, %s75
      %p77 = scmp.eq.s32.totalorder %s25, 0
      %p78 = por %p76, %p77
      %s80 = sadd.s32 %s79, 1
      %p83 = scmp.eq.s32.totalorder %s19, 3
      %p84 = scmp.ne.s32.totalorder %s79, %s81
      %p85 = scmp.eq.s32.totalorder %s19, 0
      %p86 = por %p84, %p85
      %p87 = scmp.ne.s32.totalorder %s79, %s81
      %p88 = scmp.eq.s32.totalorder %s24, 3
      %p89 = por %p87, %p88
      %p90 = scmp.ne.s32.totalorder %s81, %s82
      %p91 = scmp.eq.s32.totalorder %s24, 0
      %p92 = por %p90, %p91
      %p93 = scmp.ne.s32.totalorder %s81, %s82
      %p94 = scmp.eq.s32.totalorder %s25, 3
      %p95 = por %p93, %p94
      %p97 = scmp.ne.s32.totalorder %s82, %s96
      %p98 = scmp.eq.s32.totalorder %s25, 0
      %p99 = por %p97, %p98
      %s101 = sadd.s32 %s100, 1
      %p104 = scmp.eq.s32.totalorder %s19, 3
      %p105 = scmp.ne.s32.totalorder %s100, %s102
      %p106 = scmp.eq.s32.totalorder %s19, 0
      %p107 = por %p105, %p106
      %p108 = scmp.ne.s32.totalorder %s100, %s102
      %p109 = scmp.eq.s32.totalorder %s24, 3
      %p110 = por %p108, %p109
      %p111 = scmp.ne.s32.totalorder %s102, %s103
      %p112 = scmp.eq.s32.totalorder %s24, 0
      %p113 = por %p111, %p112
      %p114 = scmp.ne.s32.totalorder %s102, %s103
      %p115 = scmp.eq.s32.totalorder %s25, 3
      %p116 = por %p114, %p115
      %p118 = scmp.ne.s32.totalorder %s103, %s117
      %p119 = scmp.eq.s32.totalorder %s25, 0
      %p120 = por %p118, %p119
      %s121 = ssub.s32 %s19, %s26
      %p122 = scmp.eq.s32.totalorder %s121, 0
      %s124 = sadd.s32 %s123, 1
      %s125 = scalar_select %p122, %s123, %s124
      %p128 = pneg %p122
      %p129 = scmp.eq.s32.totalorder %s19, 3
      %p130 = por %p128, %p129
      %p131 = scmp.ne.s32.totalorder %s123, %s126
      %p132 = scmp.eq.s32.totalorder %s19, 0
      %p133 = por %p131, %p132
      %p134 = scmp.ne.s32.totalorder %s123, %s126
      %p135 = scmp.eq.s32.totalorder %s24, 3
      %p136 = por %p134, %p135
      %p137 = scmp.ne.s32.totalorder %s126, %s127
      %p138 = scmp.eq.s32.totalorder %s24, 0
      %p139 = por %p137, %p138
      %p140 = scmp.ne.s32.totalorder %s126, %s127
      %p141 = scmp.eq.s32.totalorder %s25, 3
      %p142 = por %p140, %p141
      %p144 = scmp.ne.s32.totalorder %s127, %s143
      %p145 = scmp.eq.s32.totalorder %s25, 0
      %p146 = por %p144, %p145
      %p147 = scmp.le.s32.totalorder 1, %s19
      %p148 = scmp.lt.s32.totalorder %s19, 5
      %p149 = pnand %p147, %p148
      %p150 = pneg %p149
      // Predicated region
      $region9: #{tpu_custom_call.1} parent=5 // pred_check
        _
      $region10: #{tpu_custom_call.1} parent=5 // pred_check_branch
        %152 = sbr.rel (%p149) target = $region12
      $region11: #{tpu_custom_call.1} parent=5 // pred_region
        %s153 = ssub.s32 %s19, 1
        // Predicated region
        $region13: #{tpu_custom_call.1} parent=11 // pred_check
          %p154 = pneg %p92
        $region14: #{tpu_custom_call.1} parent=11 // pred_check_branch
          %156 = sbr.rel (%p154) target = $region16
        $region15: #{tpu_custom_call.1} parent=11 // pred_region
          %158 = vsyncadd [#allocation6], 0
          %s159 = sshll.u32 %s2, 4
          %s160 = int_to_ptr.hbm [resolvable:$true] %s159
          %s161 = sshll.u32 [#allocation7], 4
          %s162 = int_to_ptr.vmem [resolvable:$true] %s161
          %167 = dma.hbm_to_vmem [thread:$0]  %s160, 1024, %s162, [#allocation6], 64, 64, 4
        $region16: #{tpu_custom_call.1} parent=11 // pred_fallthru
          _
        // Predicated region
        $region17: #{tpu_custom_call.1} parent=11 // pred_check
          %p168 = pneg %p113
        $region18: #{tpu_custom_call.1} parent=11 // pred_check_branch
          %170 = sbr.rel (%p168) target = $region20
        $region19: #{tpu_custom_call.1} parent=11 // pred_region
          _
        $region20: #{tpu_custom_call.1} parent=11 // pred_fallthru
          _
      $region12: #{tpu_custom_call.1} parent=5 // pred_fallthru
        _
      %p171 = scmp.lt.s32.totalorder %s19, 4
      // Predicated region
      $region21: #{tpu_custom_call.1} parent=5 // pred_check
        %p172 = pneg %p171
      $region22: #{tpu_custom_call.1} parent=5 // pred_check_branch
        %174 = sbr.rel (%p172) target = $region24
      $region23: #{tpu_custom_call.1} parent=5 // pred_region
        // Predicated region
        $region25: #{tpu_custom_call.1} parent=23 // pred_check
          %p175 = pneg %p39
        $region26: #{tpu_custom_call.1} parent=23 // pred_check_branch
          %177 = sbr.rel (%p175) target = $region28
        $region27: #{tpu_custom_call.1} parent=23 // pred_region
          %s178 = sand.u32 %s29, 1
          %s179 = scalar_lea.sflag [#allocation3], %s178
          %s180 = sand.u32 %s29, 1
          %s181 = smul.addr %s180, 32
          %s182 = scalar_lea.vmem [#allocation2], %s181
          %s183 = smul.u32 4, %s19
          %185 = vsyncadd %s179, 0
          %s186 = smul.addr %s183, 2
          %s187 = smul.addr %s186, 4
          %s188 = scalar_lea.hbm %s0, %s187
          %s189 = sshll.u32 %s188, 4
          %s190 = int_to_ptr.hbm [resolvable:$true] %s189
          %s191 = sshll.u32 %s182, 4
          %s192 = int_to_ptr.vmem [resolvable:$true] %s191
          %197 = dma.hbm_to_vmem [thread:$0]  %s190, 512, %s192, %s179, 128, 128, 8
        $region28: #{tpu_custom_call.1} parent=23 // pred_fallthru
          _
        // Predicated region
        $region29: #{tpu_custom_call.1} parent=23 // pred_check
          %p198 = pneg %p65
        $region30: #{tpu_custom_call.1} parent=23 // pred_check_branch
          %200 = sbr.rel (%p198) target = $region32
        $region31: #{tpu_custom_call.1} parent=23 // pred_region
          %s201 = sand.u32 %s19, 1
          %s202 = scalar_lea.sflag [#allocation6], %s201
          %s203 = sand.u32 %s55, 1
          %s204 = smul.addr %s203, 32
          %s205 = scalar_lea.vmem [#allocation5], %s204
          %s206 = smul.u32 4, %s19
          %208 = vsyncadd %s202, 0
          %s209 = smul.addr %s206, 2
          %s210 = smul.addr %s209, 4
          %s211 = scalar_lea.hbm %s1, %s210
          %s212 = sshll.u32 %s211, 4
          %s213 = int_to_ptr.hbm [resolvable:$true] %s212
          %s214 = sshll.u32 %s205, 4
          %s215 = int_to_ptr.vmem [resolvable:$true] %s214
          %220 = dma.hbm_to_vmem [thread:$0]  %s213, 512, %s215, %s202, 128, 128, 8
        $region32: #{tpu_custom_call.1} parent=23 // pred_fallthru
          _
      $region24: #{tpu_custom_call.1} parent=5 // pred_fallthru
        _
      %p221 = scmp.le.s32.totalorder 1, %s19
      %p222 = scmp.lt.s32.totalorder %s19, 5
      %p223 = pnand %p221, %p222
      %p224 = pneg %p223
      // Predicated region
      $region33: #{tpu_custom_call.1} parent=5 // pred_check
        _
      $region34: #{tpu_custom_call.1} parent=5 // pred_check_branch
        %226 = sbr.rel (%p223) target = $region36
      $region35: #{tpu_custom_call.1} parent=5 // pred_region
        %s227 = ssub.s32 %s19, 1
        %s228 = sand.u32 %s32, 1
        %s229 = scalar_lea.sflag [#allocation3], %s228
        %s230 = sand.u32 %s32, 1
        %s231 = smul.addr %s230, 32
        %s232 = scalar_lea.vmem [#allocation2], %s231
        // Predicated region
        $region37: #{tpu_custom_call.1} parent=35 // pred_check
          %p233 = pneg %p45
        $region38: #{tpu_custom_call.1} parent=35 // pred_check_branch
          %235 = sbr.rel (%p233) target = $region40
        $region39: #{tpu_custom_call.1} parent=35 // pred_region
          %237 = dma.done %s229, 512
        $region40: #{tpu_custom_call.1} parent=35 // pred_fallthru
          _
        %s238 = sand.u32 %s24, 1
        %s239 = scalar_lea.sflag [#allocation6], %s238
        %s240 = sand.u32 %s58, 1
        %s241 = smul.addr %s240, 32
        %s242 = scalar_lea.vmem [#allocation5], %s241
        // Predicated region
        $region41: #{tpu_custom_call.1} parent=35 // pred_check
          %p243 = pneg %p71
        $region42: #{tpu_custom_call.1} parent=35 // pred_check_branch
          %245 = sbr.rel (%p243) target = $region44
        $region43: #{tpu_custom_call.1} parent=35 // pred_region
          %247 = dma.done %s239, 512
        $region44: #{tpu_custom_call.1} parent=35 // pred_fallthru
          _
        // Predicated region
        $region45: #{tpu_custom_call.1} parent=35 // pred_check
          %p248 = pneg %p92
        $region46: #{tpu_custom_call.1} parent=35 // pred_check_branch
          %250 = sbr.rel (%p248) target = $region48
        $region47: #{tpu_custom_call.1} parent=35 // pred_region
          %252 = dma.done [#allocation6], 1024
        $region48: #{tpu_custom_call.1} parent=35 // pred_fallthru
          _
        %s253 = sand.u32 %s32, 1
        %s254 = scalar_lea.sflag [#allocation3], %s253
        %s255 = sand.u32 %s32, 1
        %s256 = smul.addr %s255, 32
        %s257 = scalar_lea.vmem [#allocation2], %s256
        %p258 = pneg %p45
        %p259 = pneg %p42
        %s260 = sand.u32 %s24, 1
        %s261 = scalar_lea.sflag [#allocation6], %s260
        %s262 = sand.u32 %s58, 1
        %s263 = smul.addr %s262, 32
        %s264 = scalar_lea.vmem [#allocation5], %s263
        %p265 = pneg %p71
        %p266 = pneg %p68
        %p267 = pneg %p92
        %p268 = pneg %p89
        %p269 = pneg %p113
        %p270 = pneg %p110
        %p271 = pneg %p139
        %p272 = pneg %p136
        %s273 = sand.u32 %s126, 1
        %s274 = scalar_lea.sflag [#allocation4], %s273
        %s275 = sand.u32 %s126, 1
        %s276 = smul.addr %s275, 32
        %s277 = scalar_lea.vmem [#allocation8], %s276
        %s278 = smul.u32 4, %s24
        %s279 = smul.u32 4, %s24
        %s280 = smul.u32 4, %s24
        %v281 = vld [vmem:[%s232] sm:$0xf]
        %v282 = vld [vmem:[%s232 + $0x8] sm:$0xf]
        %v283 = vld [vmem:[%s232 + $0x10] sm:$0xf]
        %v284 = vld [vmem:[%s232 + $0x18] sm:$0xf]
        %v285 = vld [vmem:[%s232 + $0x4] sm:$0xf]
        %v286 = vld [vmem:[%s232 + $0xc] sm:$0xf]
        %v287 = vld [vmem:[%s232 + $0x14] sm:$0xf]
        %v288 = vld [vmem:[%s232 + $0x1c] sm:$0xf]
        %v289 = vunpack.c.l.bf16 %v281
        %v290 = vunpack.c.l.bf16 %v282
        %v291 = vunpack.c.l.bf16 %v283
        %v292 = vunpack.c.l.bf16 %v284
        %v293 = vunpack.c.l.bf16 %v285
        %v294 = vunpack.c.l.bf16 %v286
        %v295 = vunpack.c.l.bf16 %v287
        %v296 = vunpack.c.l.bf16 %v288
        %v297 = vadd.f32 %v289, %v293
        %v298 = vadd.f32 %v290, %v294
        %v299 = vadd.f32 %v291, %v295
        %v300 = vadd.f32 %v292, %v296
        %v301 = vpack.c.bf16 %v297, %v297
        %v302 = vpack.c.bf16 %v298, %v298
        %v303 = vpack.c.bf16 %v299, %v299
        %v304 = vpack.c.bf16 %v300, %v300
        %v305 = vld [vmem:[%s242] sm:$0xf]
        %v306 = vld [vmem:[%s242 + $0x8] sm:$0xf]
        %v307 = vld [vmem:[%s242 + $0x10] sm:$0xf]
        %v308 = vld [vmem:[%s242 + $0x18] sm:$0xf]
        %v309 = vld [vmem:[%s242 + $0x4] sm:$0xf]
        %v310 = vld [vmem:[%s242 + $0xc] sm:$0xf]
        %v311 = vld [vmem:[%s242 + $0x14] sm:$0xf]
        %v312 = vld [vmem:[%s242 + $0x1c] sm:$0xf]
        %v313 = vunpack.c.l.bf16 %v305
        %v314 = vunpack.c.l.bf16 %v306
        %v315 = vunpack.c.l.bf16 %v307
        %v316 = vunpack.c.l.bf16 %v308
        %v317 = vunpack.c.l.bf16 %v309
        %v318 = vunpack.c.l.bf16 %v310
        %v319 = vunpack.c.l.bf16 %v311
        %v320 = vunpack.c.l.bf16 %v312
        %v321 = vadd.f32 %v313, %v317
        %v322 = vadd.f32 %v314, %v318
        %v323 = vadd.f32 %v315, %v319
        %v324 = vadd.f32 %v316, %v320
        %v325 = vpack.c.bf16 %v321, %v321
        %v326 = vpack.c.bf16 %v322, %v322
        %v327 = vpack.c.bf16 %v323, %v323
        %v328 = vpack.c.bf16 %v324, %v324
        %v329 = vunpack.c.l.bf16 %v301
        %v330 = vunpack.c.l.bf16 %v302
        %v331 = vunpack.c.l.bf16 %v303
        %v332 = vunpack.c.l.bf16 %v304
        %v333 = vunpack.c.l.bf16 %v325
        %v334 = vunpack.c.l.bf16 %v326
        %v335 = vunpack.c.l.bf16 %v327
        %v336 = vunpack.c.l.bf16 %v328
        %v337 = vadd.f32 %v329, %v333
        %v338 = vadd.f32 %v330, %v334
        %v339 = vadd.f32 %v331, %v335
        %v340 = vadd.f32 %v332, %v336
        %v341 = vpack.c.bf16 %v338, %v337
        %v342 = vpack.c.bf16 %v340, %v339
        %v343 = vld [vmem:[#allocation7] sm:$0xf]
        %v344 = vld [vmem:[#allocation7 + $0x4] sm:$0xf]
        %v345 = vld [vmem:[#allocation7 + $0x8] sm:$0xf]
        %v346 = vld [vmem:[#allocation7 + $0xc] sm:$0xf]
        %v347 = vld [vmem:[#allocation7 + $0x10] sm:$0xf]
        %v348 = vld [vmem:[#allocation7 + $0x14] sm:$0xf]
        %v349 = vld [vmem:[#allocation7 + $0x18] sm:$0xf]
        %v350 = vld [vmem:[#allocation7 + $0x1c] sm:$0xf]
        %v351 = vld [vmem:[#allocation7 + $0x20] sm:$0xf]
        %v352 = vld [vmem:[#allocation7 + $0x24] sm:$0xf]
        %v353 = vld [vmem:[#allocation7 + $0x28] sm:$0xf]
        %v354 = vld [vmem:[#allocation7 + $0x2c] sm:$0xf]
        %v355 = vld [vmem:[#allocation7 + $0x30] sm:$0xf]
        %v356 = vld [vmem:[#allocation7 + $0x34] sm:$0xf]
        %v357 = vld [vmem:[#allocation7 + $0x38] sm:$0xf]
        %v358 = vld [vmem:[#allocation7 + $0x3c] sm:$0xf]
        %v359 = vld [vmem:[%s3] sm:$0x1]
        %v361 = vperm.slane %v359, 0
        %v379 = vunpack.c.l.b16 %v343
        %v380 = vunpack.c.l.b16 %v344
        %v381 = vunpack.c.l.b16 %v345
        %v382 = vunpack.c.l.b16 %v346
        %v383 = vunpack.c.l.b16 %v347
        %v384 = vunpack.c.l.b16 %v348
        %v385 = vunpack.c.l.b16 %v349
        %v386 = vunpack.c.l.b16 %v350
        %v387 = vunpack.c.l.b16 %v351
        %v388 = vunpack.c.l.b16 %v352
        %v389 = vunpack.c.l.b16 %v353
        %v390 = vunpack.c.l.b16 %v354
        %v391 = vunpack.c.l.b16 %v355
        %v392 = vunpack.c.l.b16 %v356
        %v393 = vunpack.c.l.b16 %v357
        %v394 = vunpack.c.l.b16 %v358
        %v395 = vpack.c.b16 %v380, %v379
        %v396 = vpack.c.b16 %v382, %v381
        %v397 = vpack.c.b16 %v384, %v383
        %v398 = vpack.c.b16 %v386, %v385
        %v399 = vpack.c.b16 %v388, %v387
        %v400 = vpack.c.b16 %v390, %v389
        %v401 = vpack.c.b16 %v392, %v391
        %v402 = vpack.c.b16 %v394, %v393
        %411 = vmatpush.bf16.msra.mxu0 %v402
        %412 = vmatpush.bf16.msra.mxu0 %v401
        %413 = vmatpush.bf16.msra.mxu0 %v400
        %414 = vmatpush.bf16.msra.mxu0 %v399
        %415 = vmatpush.bf16.msra.mxu0 %v398
        %416 = vmatpush.bf16.msra.mxu0 %v397
        %417 = vmatpush.bf16.msra.mxu0 %v396
        %418 = vmatpush.bf16.msra.mxu0 %v395
        %419 = vmatmul.bf16.gmra.mxu0 %v341
        %v420 = vpop.f32.mrf.mxu0
        %v421 = vadd.f32 %v361, %v420
        %v422 = vpop.f32.mrf.mxu0
        %v423 = vadd.f32 %v361, %v422
        %424 = vmatmul.bf16.gmra.mxu0 %v342
        %v425 = vpop.f32.mrf.mxu0
        %v426 = vadd.f32 %v361, %v425
        %v427 = vpop.f32.mrf.mxu0
        %v428 = vadd.f32 %v361, %v427
        %429 = vdwg.mxu0
        %430 = vst [vmem:[%s277] sm:$0xff] %v421
        %431 = vst [vmem:[%s277 + $0x8] sm:$0xff] %v423
        %432 = vst [vmem:[%s277 + $0x10] sm:$0xff] %v426
        %433 = vst [vmem:[%s277 + $0x18] sm:$0xff] %v428
        %s434 = sand.u32 %s126, 1
        %s435 = scalar_lea.sflag [#allocation4], %s434
        %s436 = sand.u32 %s126, 1
        %s437 = smul.addr %s436, 32
        %s438 = scalar_lea.vmem [#allocation8], %s437
        // Predicated region
        $region49: #{tpu_custom_call.1} parent=35 // pred_check
          %p439 = pneg %p136
        $region50: #{tpu_custom_call.1} parent=35 // pred_check_branch
          %441 = sbr.rel (%p439) target = $region52
        $region51: #{tpu_custom_call.1} parent=35 // pred_region
          %s442 = smul.u32 4, %s24
          %444 = vsyncadd %s435, 0
          %s445 = smul.addr %s442, 8
          %s446 = scalar_lea.hbm %s4, %s445
          %s447 = sshll.u32 %s438, 4
          %s448 = int_to_ptr.vmem [resolvable:$true] %s447
          %s449 = sshll.u32 %s446, 4
          %s450 = int_to_ptr.hbm [resolvable:$true] %s449
          %455 = dma.vmem_to_hbm [thread:$0]  %s448, 512, %s450, %s435, 128, 128, 8
        $region52: #{tpu_custom_call.1} parent=35 // pred_fallthru
          _
      $region36: #{tpu_custom_call.1} parent=5 // pred_fallthru
        _
      %p456 = scmp.le.s32.totalorder 2, %s19
      // Predicated region
      $region53: #{tpu_custom_call.1} parent=5 // pred_check
        %p457 = pneg %p456
      $region54: #{tpu_custom_call.1} parent=5 // pred_check_branch
        %459 = sbr.rel (%p457) target = $region56
      $region55: #{tpu_custom_call.1} parent=5 // pred_region
        %s460 = ssub.s32 %s19, 2
        // Predicated region
        $region57: #{tpu_custom_call.1} parent=55 // pred_check
          %p461 = pneg %p142
        $region58: #{tpu_custom_call.1} parent=55 // pred_check_branch
          %463 = sbr.rel (%p461) target = $region60
        $region59: #{tpu_custom_call.1} parent=55 // pred_region
          %s464 = sand.u32 %s127, 1
          %s465 = scalar_lea.sflag [#allocation4], %s464
          %s466 = sand.u32 %s127, 1
          %s467 = smul.addr %s466, 32
          %s468 = scalar_lea.vmem [#allocation8], %s467
          %470 = dma.done %s465, 512
        $region60: #{tpu_custom_call.1} parent=55 // pred_fallthru
          _
      $region56: #{tpu_custom_call.1} parent=5 // pred_fallthru
        _
    $region6: #{tpu_custom_call.1} parent=1 // loop_footer
      %s23 = sadd.s32 1, %s19
    $region7: #{tpu_custom_call.1} parent=1 // loop_footer_branch
      %18 = sbr.rel target = $region3
    $region8: #{tpu_custom_call.1} parent=1 // loop_exit
      _
    %471 = vsyncpa [#allocation3], 1
    %s472 = scalar_lea.sflag [#allocation3], 1
    %473 = vsyncpa %s472, 1
    %474 = vsyncpa [#allocation6], 1
    %s475 = scalar_lea.sflag [#allocation6], 1
    %476 = vsyncpa %s475, 1
    %477 = vsyncpa [#allocation4], 1
    %s478 = scalar_lea.sflag [#allocation4], 1
    %479 = vsyncpa %s478, 1

</llo_original>
